<compile_context>
chip_gen: v7x
topology: tpu7x:2x2x1
jax: 0.10.0
libtpu: 0.0.40
codegen_flags: <defaults>
</compile_context>

<pallas_src>
import jax
import jax.numpy as jnp
from jax.experimental import pallas as pl
from jax.experimental.pallas import tpu as pltpu

DT = jnp.bfloat16      # {0,1} exact in bf16; MXU accumulates in f32.
DT_BYTES = 2
# TODO(synk): int8 inputs with int32 MXU accumulation (v5e/v6e) or fp8 (v7x)
# would halve HBM bytes again; kept a single bf16 code path for portability.


def _round_up(x, m):
    return ((x + m - 1) // m) * m


def _vmem_capacity_bytes():
    try:
        info = pltpu.get_tpu_info()
        return int(getattr(info, "vmem_capacity_bytes", 64 << 20))
    except Exception:
        return 64 << 20   # conservative (v7x per-TC) fallback


def plan_geometry(ni, nm, hw):
    """Padded/tile geometry shared by the operand producer and the kernel."""
    # Row padding to 16: bf16 packs two rows per sublane -> full packed vregs.
    ni_p = max(_round_up(ni, 16), 16)
    nm_p = max(_round_up(nm, 16), 16)
    # Row tiling: one tile for small Ni; 128-row tiles otherwise so the row
    # axis can run "parallel" (uses both TensorCores on v7x).
    if ni_p <= 128:
        tm = ni_p
    else:
        tm = 128
        ni_p = _round_up(ni_p, tm)

    vmem_cap = _vmem_capacity_bytes()
    input_budget = min(vmem_cap // 2, 64 << 20)          # generation-aware
    bytes_per_col = (tm + nm_p) * DT_BYTES
    # Target ~2 MiB of input bytes per grid step (amortizes ~0.35us/step
    # overhead), bounded by the double-buffered VMEM budget and array width.
    tk_target = (2 << 20) // bytes_per_col
    tk_max = max(input_budget // (2 * bytes_per_col), 128)
    hw_p128 = _round_up(hw, 128)
    tk = max((min(tk_target, tk_max, hw_p128) // 128) * 128, 128)
    # Pad HW only by what one tile needs (at most grid_k*128 extra columns),
    # not up to a multiple of a large fixed tk.
    grid_k = -(-hw_p128 // tk)                            # cdiv
    tk_eff = _round_up(-(-hw_p128 // grid_k), 128)
    hw_pad = grid_k * tk_eff

    # Honest VMEM accounting: double-buffered bf16 input tiles + f32 scratch.
    need = (2 * (tm + nm_p) * tk_eff * DT_BYTES
            + tm * _round_up(nm_p, 128) * 4 + tm * 128 * 4)
    vmem_limit = int(min(max(need * 3 // 2 + (4 << 20), 16 << 20),
                         max(vmem_cap - (8 << 20), 16 << 20)))
    return dict(ni_p=ni_p, nm_p=nm_p, tm=tm, tk=tk_eff, grid_k=grid_k,
                hw_pad=hw_pad, vmem_limit=vmem_limit)


def _pad_regions(regions, rows_p, hw_pad):
    """Pad (and cast) region masks to the kernel geometry.

    Producers should emit operands already in this geometry (see
    _regions_from_image) so this extra HBM pass is skipped.
    """
    n, hw = regions.shape
    if regions.dtype == DT and n == rows_p and hw == hw_pad:
        return regions
    return jnp.zeros((rows_p, hw_pad), DT).at[:n, :hw].set(regions.astype(DT))


def count_intersection(target_regions, mask_regions, threshold=0.0, *,
                       ni=None, nm=None, hw=None):
    """Fraction of target regions whose overlap score with some mask region
    strictly exceeds `threshold`, where score = |i & j| / |i|.

    target_regions: (Ni, HW) binary masks (filled target contours).
    mask_regions:   (Nm, HW) binary masks (filled mask contours).
    Pre-padded bf16 operands (plan_geometry shapes) are used as-is; pass the
    true ni / nm / hw in that case.
    """
    assert 0.0 <= threshold <= 1.0
    ni = int(ni) if ni is not None else int(target_regions.shape[0])
    nm = int(nm) if nm is not None else int(mask_regions.shape[0])
    hw = int(hw) if hw is not None else int(target_regions.shape[1])

    g = plan_geometry(ni, nm, hw)
    ni_p, nm_p, tm, tk = g["ni_p"], g["nm_p"], g["tm"], g["tk"]
    grid_k, hw_pad = g["grid_k"], g["hw_pad"]

    a = _pad_regions(target_regions, ni_p, hw_pad)
    b = _pad_regions(mask_regions, nm_p, hw_pad)

    thr = float(threshold)    # static module parameter -> closure constant

    def kernel(a_ref, b_ref, hit_ref, acc_ref, area_ref):
        k = pl.program_id(1)

        @pl.when(k == 0)
        def _():
            acc_ref[...] = jnp.zeros_like(acc_ref)
            area_ref[...] = jnp.zeros_like(area_ref)

        a_tile = a_ref[...]
        # Pairwise intersection counts: contract the LAST dim of BOTH operands
        # -> MXU matmul without transposing the mask tile in-kernel.
        acc_ref[...] += jax.lax.dot_general(
            a_tile, b_ref[...],
            dimension_numbers=(((1,), (1,)), ((), ())),
            preferred_element_type=jnp.float32)
        # Per-target areas: XLU row-sum; free filler while the loop is DMA-bound.
        area_ref[...] += jnp.sum(a_tile.astype(jnp.float32), axis=-1,
                                 keepdims=True)

        @pl.when(k == pl.num_programs(1) - 1)
        def _():
            acc = acc_ref[...]          # (tm, nm_p) f32 intersection counts
            area = area_ref[...]        # (tm, 1)    f32 target areas
            # score > thr  <=>  inter > thr * area   (thr >= 0). Divide-free;
            # an empty (padded) target region (area == 0) simply never hits.
            hits = acc > thr * area
            col = jax.lax.broadcasted_iota(jnp.int32, acc.shape, 1)
            hits = jnp.logical_and(hits, col < nm)   # drop padded mask columns
            hit_ref[...] = jnp.max(hits.astype(jnp.float32), axis=-1,
                                   keepdims=True)

    hits = pl.pallas_call(
        kernel,
        out_shape=jax.ShapeDtypeStruct((ni_p, 1), jnp.float32),
        grid=(ni_p // tm, grid_k),
        in_specs=[
            pl.BlockSpec((tm, tk), lambda i, k: (i, k)),    # target row tile
            pl.BlockSpec((nm_p, tk), lambda i, k: (0, k)),  # all mask rows
        ],
        out_specs=pl.BlockSpec((tm, 1), lambda i, k: (i, 0)),
        scratch_shapes=[
            pltpu.VMEM((tm, nm_p), jnp.float32),   # intersection accumulator
            pltpu.VMEM((tm, 1), jnp.float32),      # per-target area accumulator
        ],
        compiler_params=pltpu.CompilerParams(
            dimension_semantics=("parallel", "arbitrary"),
            vmem_limit_bytes=g["vmem_limit"]),
    )(a, b)

    # Padded target rows have zero area / zero intersections -> contribute 0.
    return jnp.sum(hits) / jnp.float32(ni)


def _regions_from_image(img_flat, n_regions, rows_p, hw_pad):
    """Deterministic stand-in for cv2 contour extraction + drawContours.

    Buckets pixel intensities into n_regions bands; each band is one filled
    'contour region' mask.  Emits the mask directly in the kernel dtype and
    padded geometry (rows_p, hw_pad) so no extra pad/cast HBM pass is needed
    before the kernel.
    """
    # TODO(synk): cv2.medianBlur / Canny / morphologyEx / findContours have no
    # Pallas equivalent; regions are synthesized from intensity bands instead.
    hw = img_flat.shape[0]
    levels = jnp.clip(jnp.floor(img_flat * n_regions).astype(jnp.int32),
                      0, n_regions - 1)
    levels = jnp.full((hw_pad,), -1, jnp.int32).at[:hw].set(levels)  # pads match nothing
    row_ids = jnp.arange(rows_p, dtype=jnp.int32)        # rows >= n_regions stay empty
    regions = levels[None, :] == row_ids[:, None]
    # guarantee every real region is non-empty (reference contours are non-empty)
    col_ids = jnp.arange(hw_pad, dtype=jnp.int32)
    diag = (row_ids[:, None] == col_ids[None, :]) & (row_ids[:, None] < n_regions)
    return jnp.logical_or(regions, diag).astype(DT)


if __name__ == "__main__":
    H, W = 16, 16
    N_REGIONS = 8          # number of synthetic "contours" per image
    THRESHOLD = 0.0        # module default treshold=0

    key = jax.random.PRNGKey(0)
    k_mask, k_target = jax.random.split(key)
    # single-channel H x W "images" (grayscale), values in [0, 1)
    mask_img = jax.random.uniform(k_mask, (H, W), dtype=jnp.float32)
    target_img = jax.random.uniform(k_target, (H, W), dtype=jnp.float32)

    ni = nm = N_REGIONS
    hw = H * W
    g = plan_geometry(ni, nm, hw)
    # Operands produced directly in the kernel dtype + padded geometry, so the
    # wrapper does not re-read/re-write them just to pad and cast.
    target_regions = _regions_from_image(target_img.reshape(-1), ni,
                                         g["ni_p"], g["hw_pad"])
    mask_regions = _regions_from_image(mask_img.reshape(-1), nm,
                                       g["nm_p"], g["hw_pad"])

    result = count_intersection(target_regions, mask_regions,
                                threshold=THRESHOLD, ni=ni, nm=nm, hw=hw)
    jax.block_until_ready(result)

    # pure-JAX reference of the kernel math for a sanity check
    tr = target_regions[:ni, :hw].astype(jnp.float32)
    mr = mask_regions[:nm, :hw].astype(jnp.float32)
    inter_ref = tr @ mr.T
    area_ref = tr.sum(axis=-1, keepdims=True)
    score_ref = (inter_ref > 0) * inter_ref / area_ref
    expected = jnp.mean(jnp.any(score_ref > THRESHOLD, axis=-1).astype(jnp.float32))
    assert jnp.allclose(result, expected, atol=1e-6), (result, expected)

    print("KERNEL_OK")
</pallas_src>

<mosaic_0001>
module attributes {stable_mosaic.version = 11 : i64} {
  func.func @kernel(%arg0: i32, %arg1: i32, %arg2: memref<16x256xbf16, #tpu.memory_space<vmem>>, %arg3: memref<16x256xbf16, #tpu.memory_space<vmem>>, %arg4: memref<16x1xf32, #tpu.memory_space<vmem>>, %arg5: memref<16x16xf32, #tpu.memory_space<vmem>>, %arg6: memref<16x1xf32, #tpu.memory_space<vmem>>) attributes {dimension_semantics = [#tpu.dimension_semantics<parallel>, #tpu.dimension_semantics<arbitrary>], iteration_bounds = array<i64: 1, 1>, scalar_prefetch = 0 : i64, scratch_operands = 2 : i64, tpu.core_type = #tpu.core_type<tc>, window_params = [{transform_indices = @transform_0, window_bounds = array<i64: 16, 256>}, {transform_indices = @transform_1, window_bounds = array<i64: 16, 256>}, {transform_indices = @transform_2, window_bounds = array<i64: 16, 1>}]} {
    %c0_i32 = arith.constant 0 : i32
    %0 = arith.cmpi eq, %arg1, %c0_i32 : i32
    %1 = arith.extui %0 : i1 to i32
    %c0_i32_0 = arith.constant 0 : i32
    %2 = arith.cmpi ne, %1, %c0_i32_0 : i32
    scf.if %2 {
      %cst_15 = arith.constant 0.000000e+00 : f32
      %18 = vector.broadcast %cst_15 : f32 to vector<16x16xf32>
      %c0_16 = arith.constant 0 : index
      %c0_17 = arith.constant 0 : index
      %19 = vector.load %arg5[%c0_16, %c0_17] : memref<16x16xf32, #tpu.memory_space<vmem>>, vector<16x16xf32>
      tpu.vector_store %arg5[%c0_16, %c0_17], %18 {strides = array<i32>} : memref<16x16xf32, #tpu.memory_space<vmem>>, vector<16x16xf32>,
      %cst_18 = arith.constant 0.000000e+00 : f32
      %20 = vector.broadcast %cst_18 : f32 to vector<16x1xf32>
      %c0_19 = arith.constant 0 : index
      %c0_20 = arith.constant 0 : index
      %21 = vector.load %arg6[%c0_19, %c0_20] : memref<16x1xf32, #tpu.memory_space<vmem>>, vector<16x1xf32>
      tpu.vector_store %arg6[%c0_19, %c0_20], %20 {strides = array<i32>} : memref<16x1xf32, #tpu.memory_space<vmem>>, vector<16x1xf32>,
    } else {
    }
    %c0 = arith.constant 0 : index
    %c0_1 = arith.constant 0 : index
    %3 = vector.load %arg2[%c0, %c0_1] : memref<16x256xbf16, #tpu.memory_space<vmem>>, vector<16x256xbf16>
    %c0_2 = arith.constant 0 : index
    %c0_3 = arith.constant 0 : index
    %4 = vector.load %arg5[%c0_2, %c0_3] : memref<16x16xf32, #tpu.memory_space<vmem>>, vector<16x16xf32>
    %c0_4 = arith.constant 0 : index
    %c0_5 = arith.constant 0 : index
    %5 = vector.load %arg3[%c0_4, %c0_5] : memref<16x256xbf16, #tpu.memory_space<vmem>>, vector<16x256xbf16>
    %cst = arith.constant dense<0.000000e+00> : vector<16x16xf32>
    %6 = tpu.matmul %3, %5, %cst {dimension_numbers = #tpu.dot_dimension_numbers<[1], [1], [0], [0], [0, 0, 1, 0], [], []>} : vector<16x256xbf16>, vector<16x256xbf16>, vector<16x16xf32> -> vector<16x16xf32>
    %7 = arith.addf %4, %6 : vector<16x16xf32>
    %c0_6 = arith.constant 0 : index
    %c0_7 = arith.constant 0 : index
    %8 = vector.load %arg5[%c0_6, %c0_7] : memref<16x16xf32, #tpu.memory_space<vmem>>, vector<16x16xf32>
    tpu.vector_store %arg5[%c0_6, %c0_7], %7 {strides = array<i32>} : memref<16x16xf32, #tpu.memory_space<vmem>>, vector<16x16xf32>,
    %c0_8 = arith.constant 0 : index
    %c0_9 = arith.constant 0 : index
    %9 = vector.load %arg6[%c0_8, %c0_9] : memref<16x1xf32, #tpu.memory_space<vmem>>, vector<16x1xf32>
    %10 = arith.extf %3 : vector<16x256xbf16> to vector<16x256xf32>
    %cst_10 = arith.constant dense<0.000000e+00> : vector<16xf32>
    %11 = vector.multi_reduction <add>, %10, %cst_10 [1] : vector<16x256xf32> to vector<16xf32>
    %12 = vector.shape_cast %11 : vector<16xf32> to vector<16x1xf32>
    %13 = arith.addf %9, %12 : vector<16x1xf32>
    %c0_11 = arith.constant 0 : index
    %c0_12 = arith.constant 0 : index
    %14 = vector.load %arg6[%c0_11, %c0_12] : memref<16x1xf32, #tpu.memory_space<vmem>>, vector<16x1xf32>
    tpu.vector_store %arg6[%c0_11, %c0_12], %13 {strides = array<i32>} : memref<16x1xf32, #tpu.memory_space<vmem>>, vector<16x1xf32>,
    %c0_i32_13 = arith.constant 0 : i32
    %15 = arith.cmpi eq, %arg1, %c0_i32_13 : i32
    %16 = arith.extui %15 : i1 to i32
    %c0_i32_14 = arith.constant 0 : i32
    %17 = arith.cmpi ne, %16, %c0_i32_14 : i32
    scf.if %17 {
      %c0_15 = arith.constant 0 : index
      %c0_16 = arith.constant 0 : index
      %18 = vector.load %arg5[%c0_15, %c0_16] : memref<16x16xf32, #tpu.memory_space<vmem>>, vector<16x16xf32>
      %c0_17 = arith.constant 0 : index
      %c0_18 = arith.constant 0 : index
      %19 = vector.load %arg6[%c0_17, %c0_18] : memref<16x1xf32, #tpu.memory_space<vmem>>, vector<16x1xf32>
      %cst_19 = arith.constant 0.000000e+00 : f32
      %20 = vector.broadcast %cst_19 : f32 to vector<16x1xf32>
      %21 = arith.mulf %20, %19 : vector<16x1xf32>
      %22 = vector.broadcast %21 : vector<16x1xf32> to vector<16x16xf32>
      %23 = arith.cmpf ogt, %18, %22 : vector<16x16xf32>
      %24 = tpu.iota {dimensions = array<i32: 1>} : vector<16x16xi32>
      %c8_i32 = arith.constant 8 : i32
      %25 = vector.broadcast %c8_i32 : i32 to vector<16x16xi32>
      %26 = arith.cmpi slt, %24, %25 : vector<16x16xi32>
      %27 = arith.andi %23, %26 : vector<16x16xi1>
      %28 = arith.extui %27 : vector<16x16xi1> to vector<16x16xi32>
      %29 = arith.sitofp %28 : vector<16x16xi32> to vector<16x16xf32>
      %cst_20 = arith.constant dense<0xFF800000> : vector<16xf32>
      %30 = vector.multi_reduction <maximumf>, %29, %cst_20 [1] : vector<16x16xf32> to vector<16xf32>
      %31 = vector.shape_cast %30 : vector<16xf32> to vector<16x1xf32>
      %c0_21 = arith.constant 0 : index
      %c0_22 = arith.constant 0 : index
      %32 = vector.load %arg4[%c0_21, %c0_22] : memref<16x1xf32, #tpu.memory_space<vmem>>, vector<16x1xf32>
      tpu.vector_store %arg4[%c0_21, %c0_22], %31 {strides = array<i32>} : memref<16x1xf32, #tpu.memory_space<vmem>>, vector<16x1xf32>,
    } else {
    }
    return
  }
  func.func @transform_0(%arg0: i32, %arg1: i32) -> (i32, i32) {
    %c0_i32 = arith.constant 0 : i32
    return %arg0, %arg1 : i32, i32
  }
  func.func @transform_1(%arg0: i32, %arg1: i32) -> (i32, i32) {
    %c0_i32 = arith.constant 0 : i32
    %c0_i32_0 = arith.constant 0 : i32
    return %c0_i32, %arg1 : i32, i32
  }
  func.func @transform_2(%arg0: i32, %arg1: i32) -> (i32, i32) {
    %c0_i32 = arith.constant 0 : i32
    %c0_i32_0 = arith.constant 0 : i32
    return %arg0, %c0_i32 : i32, i32
  }
}

</mosaic_0001>

<llo_original>
// kernel: tpu_custom_call.1
$region0: #{tpu_custom_call.1}
  #allocation0 [shape = 'u32[]', space=smem, size = 0x4, offset = 0x4, fixed_abs, tag = 'smem constant byte address 0x4 - core index']
  #allocation1 [shape = 'u32[144,128]{1,0:T(1,128)}', space=vmem, size = 0x12000, scoped, tag = 'internal scratch']
  #allocation2 [shape = 'f32[16,16]{1,0:T(8,128)}', space=vmem, size = 0x2000, scoped, tag = 'scratch operand']
  #allocation3 [shape = 'f32[16,1]{1,0:T(8,128)}', space=vmem, size = 0x2000, scoped, tag = 'scratch operand']
  %s0 = inlined_call_operand.hbm [shape: bf16[16,256], index: 0, kind: input, shape index: {}]
  %s1 = inlined_call_operand.hbm [shape: bf16[16,256], index: 1, kind: input, shape index: {}]
  %s2 = inlined_call_operand.vmem [shape: f32[16,1], index: 2, kind: output, shape index: {}]
  %s3 = sld [smem:[#allocation0]]
  $region34: #{tpu_custom_call.1} parent=0
    _
  %s5 = ssub.s32 1, %s3
  %s6 = scalar_select 0, %s5, %s3
  $region1: #{tpu_custom_call.1} parent=0
    #allocation4 [shape = 'u8[8192]{0}', space=vmem, size = 0x2000, scoped, tag = 'input window, operand 0, single buffered']
    #allocation5 [shape = 's32[1]{0}', space=sflag, size = 0x4, scoped, tag = 'scoped memory for tpu_custom_call.1']
    #allocation6 [shape = 'u8[8192]{0}', space=vmem, size = 0x2000, scoped, tag = 'input window, operand 1, single buffered']
    #allocation7 [shape = 's32[1]{0}', space=sflag, size = 0x4, scoped, tag = 'scoped memory for tpu_custom_call.1']
    %7 = vsyncpa [#allocation5], 0
    %8 = vsyncpa [#allocation7], 0
    // Predicated region
    $region2: #{tpu_custom_call.1} parent=1 // pred_check
      _
    $region3: #{tpu_custom_call.1} parent=1 // pred_check_branch
      %10 = sbr.rel (0) target = $region5
    $region4: #{tpu_custom_call.1} parent=1 // pred_region
      %s12 = ssub.s32 256, 256
      %13 = vsyncadd [#allocation5], %s12
      %s14 = sshll.u32 [#allocation4], 4
      %s15 = int_to_ptr.vmem [resolvable:$true] %s14
      %20 = dma.hbm_to_vmem [thread:$0]  %s0, 256, %s15, [#allocation5], 128, 128, 8
    $region5: #{tpu_custom_call.1} parent=1 // pred_fallthru
      _
    // Predicated region
    $region6: #{tpu_custom_call.1} parent=1 // pred_check
      _
    $region7: #{tpu_custom_call.1} parent=1 // pred_check_branch
      %22 = sbr.rel (0) target = $region9
    $region8: #{tpu_custom_call.1} parent=1 // pred_region
      %s24 = ssub.s32 256, 256
      %25 = vsyncadd [#allocation7], %s24
      %s26 = sshll.u32 [#allocation6], 4
      %s27 = int_to_ptr.vmem [resolvable:$true] %s26
      %32 = dma.hbm_to_vmem [thread:$0]  %s1, 256, %s27, [#allocation7], 128, 128, 8
    $region9: #{tpu_custom_call.1} parent=1 // pred_fallthru
      _
    // Predicated region
    $region10: #{tpu_custom_call.1} parent=1 // pred_check
      _
    $region11: #{tpu_custom_call.1} parent=1 // pred_check_branch
      %34 = sbr.rel (0) target = $region13
    $region12: #{tpu_custom_call.1} parent=1 // pred_region
      %35 = dma.done [#allocation5], 256
    $region13: #{tpu_custom_call.1} parent=1 // pred_fallthru
      _
    // Predicated region
    $region14: #{tpu_custom_call.1} parent=1 // pred_check
      _
    $region15: #{tpu_custom_call.1} parent=1 // pred_check_branch
      %37 = sbr.rel (0) target = $region17
    $region16: #{tpu_custom_call.1} parent=1 // pred_region
      %38 = dma.done [#allocation7], 256
    $region17: #{tpu_custom_call.1} parent=1 // pred_fallthru
      _
    %p40 = scmp.eq.s32.totalorder 0, 0
    // Predicated region
    $region18: #{tpu_custom_call.1} parent=1 // pred_check
      %p41 = pneg %p40
    $region19: #{tpu_custom_call.1} parent=1 // pred_check_branch
      %43 = sbr.rel (%p41) target = $region21
    $region20: #{tpu_custom_call.1} parent=1 // pred_region
      %vm44 = vcmask 130048
      %45 = vst.msk [vmem:[#allocation2] sm:$0xff] %vm44, 0.0
      %46 = vst.msk [vmem:[#allocation2 + $0x8] sm:$0xff] %vm44, 0.0
      %vm47 = vcmask 7168
      %48 = vst.msk [vmem:[#allocation3] sm:$0xff] %vm47, 0.0
      %49 = vst.msk [vmem:[#allocation3 + $0x8] sm:$0xff] %vm47, 0.0
    $region21: #{tpu_custom_call.1} parent=1 // pred_fallthru
      _
    %v50 = vld [vmem:[#allocation4] sm:$0xff]
    %v51 = vld [vmem:[#allocation4 + $0x8] sm:$0xff]
    %v52 = vld [vmem:[#allocation2] sm:$0xff]
    %v53 = vld [vmem:[#allocation2 + $0x8] sm:$0xff]
    %v54 = vld [vmem:[#allocation6] sm:$0xff]
    %v55 = vld [vmem:[#allocation6 + $0x8] sm:$0xff]
    %v58 = vunpack.c.l.b16 %v50
    %v59 = vunpack.c.h.b16 %v50
    %v60 = vunpack.c.l.b16 %v51
    %v61 = vunpack.c.h.b16 %v51
    %v62 = vpack.c.b16 %v60, %v58
    %v63 = vpack.c.b16 %v61, %v59
    %v68 = vunpack.c.l.b16 %v54
    %v69 = vunpack.c.h.b16 %v54
    %v70 = vunpack.c.l.b16 %v55
    %v71 = vunpack.c.h.b16 %v55
    %v72 = vpack.c.b16 %v70, %v68
    %v73 = vpack.c.b16 %v71, %v69
    %76 = vmatprep.subr.bf16.mxu0 %v73
    %77 = vmatpush1.bf16.xpose.msra.mxu0 %v72
    %78 = vmatprep.subr.bf16.mxu0 0
    %79 = vmatpush1.bf16.xpose.msra.mxu0 0
    %80 = vmatprep.subr.bf16.mxu0 0
    %81 = vmatpush1.bf16.xpose.msra.mxu0 0
    %82 = vmatprep.subr.bf16.mxu0 0
    %83 = vmatpush1.bf16.xpose.msra.mxu0 0
    %84 = vmatprep.subr.bf16.mxu0 0
    %85 = vmatpush1.bf16.xpose.msra.mxu0 0
    %86 = vmatprep.subr.bf16.mxu0 0
    %87 = vmatpush1.bf16.xpose.msra.mxu0 0
    %88 = vmatprep.subr.bf16.mxu0 0
    %89 = vmatpush1.bf16.xpose.msra.mxu0 0
    %90 = vmatprep.subr.bf16.mxu0 0
    %91 = vmatpush1.bf16.xpose.msra.mxu0 0
    %92 = vmatprep.subr.bf16.mxu0 0
    %93 = vmatpush1.bf16.xpose.msra.mxu0 0
    %94 = vmatprep.subr.bf16.mxu0 0
    %95 = vmatpush1.bf16.xpose.msra.mxu0 0
    %96 = vmatprep.subr.bf16.mxu0 0
    %97 = vmatpush1.bf16.xpose.msra.mxu0 0
    %98 = vmatprep.subr.bf16.mxu0 0
    %99 = vmatpush1.bf16.xpose.msra.mxu0 0
    %100 = vmatprep.subr.bf16.mxu0 0
    %101 = vmatpush1.bf16.xpose.msra.mxu0 0
    %102 = vmatprep.subr.bf16.mxu0 0
    %103 = vmatpush1.bf16.xpose.msra.mxu0 0
    %104 = vmatprep.subr.bf16.mxu0 0
    %105 = vmatpush1.bf16.xpose.msra.mxu0 0
    %106 = vmatprep.subr.bf16.mxu0 0
    %107 = vmatpush1.bf16.xpose.msra.mxu0 0
    %108 = vmatprep.mubr.bf16.mxu0 %v63
    %109 = vmatmul.mubr.bf16.gmra.mrb[0].mxu0 %v62
    %v110 = vpop.f32.mrb[0].mxu0
    %v111 = vadd.f32 0.0, %v110
    %v112 = vpop.f32.mrb[0].mxu0
    %v113 = vpop.f32.mrb[0].mxu0
    %v114 = vadd.f32 0.0, %v113
    %v115 = vpop.f32.mrb[0].mxu0
    %116 = vdwg.mxu0
    %v117 = vadd.f32 %v52, %v111
    %v118 = vadd.f32 %v53, %v114
    %vm119 = vcmask 130048
    %120 = vst.msk [vmem:[#allocation2] sm:$0xff] %vm119, %v117
    %121 = vst.msk [vmem:[#allocation2 + $0x8] sm:$0xff] %vm119, %v118
    %v122 = vld [vmem:[#allocation3] sm:$0xff]
    %v123 = vld [vmem:[#allocation3 + $0x8] sm:$0xff]
    %v124 = vunpack.c.l.bf16 %v50
    %v125 = vunpack.c.h.bf16 %v50
    %v126 = vunpack.c.l.bf16 %v51
    %v127 = vunpack.c.h.bf16 %v51
    %v128 = vadd.f32 %v124, %v125
    %129 = vadd.xlane.f32.xlu0 %v128
    %v130 = vpop.xlane.xlu0 %129
    %v131 = vadd.f32 %v126, %v127
    %132 = vadd.xlane.f32.xlu0 %v131
    %v133 = vpop.xlane.xlu0 %132
    %v134 = vadd.f32 %v122, %v130
    %v135 = vadd.f32 %v123, %v133
    %vm136 = vcmask 7168
    %137 = vst.msk [vmem:[#allocation3] sm:$0xff] %vm136, %v134
    %138 = vst.msk [vmem:[#allocation3 + $0x8] sm:$0xff] %vm136, %v135
    // Predicated region
    $region22: #{tpu_custom_call.1} parent=1 // pred_check
      %p139 = pneg %p40
    $region23: #{tpu_custom_call.1} parent=1 // pred_check_branch
      %141 = sbr.rel (%p139) target = $region25
    $region24: #{tpu_custom_call.1} parent=1 // pred_region
      %v142 = vld [vmem:[#allocation2] sm:$0xff]
      %v143 = vld [vmem:[#allocation2 + $0x8] sm:$0xff]
      %v144 = vld [vmem:[#allocation3] sm:$0xff]
      %v145 = vld [vmem:[#allocation3 + $0x8] sm:$0xff]
      %v146 = vmul.f32 %v144, 0.0
      %v147 = vmul.f32 %v145, 0.0
      %149 = vset.pattern.permute.xlu0 0
      %150 = vperm.xlu0 %149, %v146
      %v151 = vpop.permute.xlu0 %150
      %154 = vset.pattern.permute.xlu0 0
      %155 = vperm.xlu0 %154, %v147
      %v156 = vpop.permute.xlu0 %155
      %vm158 = vcmp.gt.f32.partialorder %v142, %v151
      %vm159 = vcmp.gt.f32.partialorder %v143, %v156
      %v160 = vlaneseq
      %v161 = vand.u32 %v160, 127
      %vm162 = vcmp.lt.s32.totalorder %v161, 8
      %vm163 = vmand %vm158, %vm162
      %vm164 = vmand %vm159, %vm162
      %v165 = vsel %vm163, 1, 0
      %v166 = vsel %vm164, 1, 0
      %v167 = vcvt.s32.f32 %v165
      %v168 = vcvt.s32.f32 %v166
      %v169 = vsel %vm119, %v167, -inf
      %170 = vmax.xlane.f32.xlu0 %v169
      %v171 = vpop.xlane.xlu0 %170
      %v172 = vsel %vm119, %v168, -inf
      %173 = vmax.xlane.f32.xlu0 %v172
      %v174 = vpop.xlane.xlu0 %173
      %175 = vst.msk [vmem:[%s2] sm:$0xff] %vm136, %v171
      %176 = vst.msk [vmem:[%s2 + $0x8] sm:$0xff] %vm136, %v174
    $region25: #{tpu_custom_call.1} parent=1 // pred_fallthru
      _
    // Predicated region
    $region26: #{tpu_custom_call.1} parent=1 // pred_check
      _
    $region27: #{tpu_custom_call.1} parent=1 // pred_check_branch
      %178 = sbr.rel (0) target = $region29
    $region28: #{tpu_custom_call.1} parent=1 // pred_region
      _
    $region29: #{tpu_custom_call.1} parent=1 // pred_fallthru
      _
    // Predicated region
    $region30: #{tpu_custom_call.1} parent=1 // pred_check
      _
    $region31: #{tpu_custom_call.1} parent=1 // pred_check_branch
      %180 = sbr.rel (0) target = $region33
    $region32: #{tpu_custom_call.1} parent=1 // pred_region
      _
    $region33: #{tpu_custom_call.1} parent=1 // pred_fallthru
      _
    %181 = vsyncpa [#allocation5], 1
    %182 = vsyncpa [#allocation7], 1

</llo_original>
